<compile_context>
chip_gen: v7x
topology: tpu7x:2x2x1
jax: 0.10.0
libtpu: 0.0.40
codegen_flags: <defaults>
</compile_context>

<pallas_src>
import jax
import jax.numpy as jnp
from jax.experimental import pallas as pl
from jax.experimental.pallas import tpu as pltpu


def _mountain_pad_kernel(x_ref, o_ref):
    # x_ref: (TB, C, H, W)   o_ref: (TB, C, H+2, W+2)
    tb, c, h, w = x_ref.shape
    hp, wp = h + 2, w + 2
    dtype = o_ref.dtype
    one = jnp.ones((), dtype)
    zero = jnp.zeros((), dtype)

    # Per-channel border value: 1.0 for channel 0, 0.0 for channels 1..4.
    ch_row = jax.lax.broadcasted_iota(jnp.int32, (tb, c, 1, wp), 1)
    row_pad = jnp.where(ch_row == 0, one, zero)
    ch_col = jax.lax.broadcasted_iota(jnp.int32, (tb, c, hp, 1), 1)
    col_pad = jnp.where(ch_col == 0, one, zero)

    # Borders: each output element written exactly once (corners overlap with
    # identical values, which is benign).
    o_ref[:, :, pl.ds(0, 1), :] = row_pad            # top row
    o_ref[:, :, pl.ds(hp - 1, 1), :] = row_pad       # bottom row
    o_ref[:, :, :, pl.ds(0, 1)] = col_pad            # left column
    o_ref[:, :, :, pl.ds(wp - 1, 1)] = col_pad       # right column

    # Interior: direct copy of the input tile.
    o_ref[:, :, pl.ds(1, h), pl.ds(1, w)] = x_ref[...]


def _choose_batch_tile(B, C, H, W, itemsize, budget_bytes=8 * 1024 * 1024):
    """Largest TB (dividing B) whose double-buffered in+out tiles fit budget."""
    per_batch = 2 * C * (H * W + (H + 2) * (W + 2)) * itemsize  # 2x = double buffer
    tb = max(1, min(B, budget_bytes // max(per_batch, 1)))
    while B % tb:  # snap down to a divisor of B so blocks never run past bounds
        tb -= 1
    return tb


def mountain_pad(x):
    """x: (B, 5, H, W) float array -> (B, 5, H+2, W+2)."""
    B, C, H, W = x.shape
    assert C == 5, "MountainPadder expects exactly 5 channels"

    TB = _choose_batch_tile(B, C, H, W, x.dtype.itemsize)
    grid = (B // TB,)

    out_shape = jax.ShapeDtypeStruct((B, C, H + 2, W + 2), x.dtype)

    return pl.pallas_call(
        _mountain_pad_kernel,
        out_shape=out_shape,
        grid_spec=pltpu.PrefetchScalarGridSpec(
            num_scalar_prefetch=0,
            grid=grid,
            in_specs=[
                pl.BlockSpec((TB, C, H, W), lambda i: (i, 0, 0, 0)),
            ],
            out_specs=pl.BlockSpec((TB, C, H + 2, W + 2), lambda i: (i, 0, 0, 0)),
        ),
        compiler_params=pltpu.CompilerParams(
            dimension_semantics=("parallel",),
        ),
    )(x)


def mountain_pad_ref(x):
    """Pure-JAX reference matching the PyTorch forward exactly."""
    B, C, H, W = x.shape
    pad_vals = jnp.array([1.0, 0.0, 0.0, 0.0, 0.0], dtype=x.dtype).reshape(1, C, 1, 1)
    side = jnp.broadcast_to(pad_vals, (B, C, H, 1))
    hpad = jnp.concatenate([side, x, side], axis=3)
    vert = jnp.broadcast_to(pad_vals, (B, C, 1, W + 2))
    return jnp.concatenate([vert, hpad, vert], axis=2)


if __name__ == "__main__":
    key = jax.random.PRNGKey(0)
    B, C, H, W = 2, 5, 16, 16  # channel count fixed at 5 by the module semantics
    x = jax.random.normal(key, (B, C, H, W), dtype=jnp.float32)

    out = mountain_pad(x)
    out = jax.block_until_ready(out)

    expected = mountain_pad_ref(x)
    assert out.shape == (B, C, H + 2, W + 2)
    assert jnp.allclose(out, expected), "Pallas output does not match reference"

    print("KERNEL_OK")
</pallas_src>

<mosaic_0001>
module attributes {stable_mosaic.version = 11 : i64} {
  func.func @_mountain_pad_kernel(%arg0: i32, %arg1: memref<2x5x16x16xf32, #tpu.memory_space<vmem>>, %arg2: memref<2x5x18x18xf32, #tpu.memory_space<vmem>>) attributes {dimension_semantics = [#tpu.dimension_semantics<parallel>], iteration_bounds = array<i64: 1>, scalar_prefetch = 0 : i64, scratch_operands = 0 : i64, tpu.core_type = #tpu.core_type<tc>, window_params = [{transform_indices = @transform_0, window_bounds = array<i64: 2, 5, 16, 16>}, {transform_indices = @transform_1, window_bounds = array<i64: 2, 5, 18, 18>}]} {
    %0 = tpu.iota {dimensions = array<i32: 1>} : vector<2x5x1x18xi32>
    %c0_i32 = arith.constant 0 : i32
    %1 = vector.broadcast %c0_i32 : i32 to vector<2x5x1x18xi32>
    %2 = arith.cmpi eq, %0, %1 : vector<2x5x1x18xi32>
    %cst = arith.constant 1.000000e+00 : f32
    %cst_0 = arith.constant 0.000000e+00 : f32
    %3 = vector.broadcast %cst : f32 to vector<2x5x1x18xf32>
    %4 = vector.broadcast %cst_0 : f32 to vector<2x5x1x18xf32>
    %5 = arith.select %2, %3, %4 : vector<2x5x1x18xi1>, vector<2x5x1x18xf32>
    %6 = tpu.iota {dimensions = array<i32: 1>} : vector<2x5x18x1xi32>
    %c0_i32_1 = arith.constant 0 : i32
    %7 = vector.broadcast %c0_i32_1 : i32 to vector<2x5x18x1xi32>
    %8 = arith.cmpi eq, %6, %7 : vector<2x5x18x1xi32>
    %cst_2 = arith.constant 1.000000e+00 : f32
    %cst_3 = arith.constant 0.000000e+00 : f32
    %9 = vector.broadcast %cst_2 : f32 to vector<2x5x18x1xf32>
    %10 = vector.broadcast %cst_3 : f32 to vector<2x5x18x1xf32>
    %11 = arith.select %8, %9, %10 : vector<2x5x18x1xi1>, vector<2x5x18x1xf32>
    %c0 = arith.constant 0 : index
    %c0_4 = arith.constant 0 : index
    %c0_5 = arith.constant 0 : index
    %c0_6 = arith.constant 0 : index
    %12 = vector.load %arg2[%c0, %c0_4, %c0_5, %c0_6] : memref<2x5x18x18xf32, #tpu.memory_space<vmem>>, vector<2x5x1x18xf32>
    tpu.vector_store %arg2[%c0, %c0_4, %c0_5, %c0_6], %5 {strides = array<i32>} : memref<2x5x18x18xf32, #tpu.memory_space<vmem>>, vector<2x5x1x18xf32>,
    %c0_7 = arith.constant 0 : index
    %c0_8 = arith.constant 0 : index
    %c17 = arith.constant 17 : index
    %c0_9 = arith.constant 0 : index
    %13 = vector.load %arg2[%c0_7, %c0_8, %c17, %c0_9] : memref<2x5x18x18xf32, #tpu.memory_space<vmem>>, vector<2x5x1x18xf32>
    tpu.vector_store %arg2[%c0_7, %c0_8, %c17, %c0_9], %5 {strides = array<i32>} : memref<2x5x18x18xf32, #tpu.memory_space<vmem>>, vector<2x5x1x18xf32>,
    %c0_10 = arith.constant 0 : index
    %c0_11 = arith.constant 0 : index
    %c0_12 = arith.constant 0 : index
    %c0_13 = arith.constant 0 : index
    %14 = vector.load %arg2[%c0_10, %c0_11, %c0_12, %c0_13] : memref<2x5x18x18xf32, #tpu.memory_space<vmem>>, vector<2x5x18x1xf32>
    tpu.vector_store %arg2[%c0_10, %c0_11, %c0_12, %c0_13], %11 {strides = array<i32>} : memref<2x5x18x18xf32, #tpu.memory_space<vmem>>, vector<2x5x18x1xf32>,
    %c0_14 = arith.constant 0 : index
    %c0_15 = arith.constant 0 : index
    %c0_16 = arith.constant 0 : index
    %c17_17 = arith.constant 17 : index
    %15 = vector.load %arg2[%c0_14, %c0_15, %c0_16, %c17_17] : memref<2x5x18x18xf32, #tpu.memory_space<vmem>>, vector<2x5x18x1xf32>
    tpu.vector_store %arg2[%c0_14, %c0_15, %c0_16, %c17_17], %11 {strides = array<i32>} : memref<2x5x18x18xf32, #tpu.memory_space<vmem>>, vector<2x5x18x1xf32>,
    %c0_18 = arith.constant 0 : index
    %c0_19 = arith.constant 0 : index
    %c0_20 = arith.constant 0 : index
    %c0_21 = arith.constant 0 : index
    %16 = vector.load %arg1[%c0_18, %c0_19, %c0_20, %c0_21] : memref<2x5x16x16xf32, #tpu.memory_space<vmem>>, vector<2x5x16x16xf32>
    %c0_22 = arith.constant 0 : index
    %c0_23 = arith.constant 0 : index
    %c1 = arith.constant 1 : index
    %c1_24 = arith.constant 1 : index
    %17 = vector.load %arg2[%c0_22, %c0_23, %c1, %c1_24] : memref<2x5x18x18xf32, #tpu.memory_space<vmem>>, vector<2x5x16x16xf32>
    tpu.vector_store %arg2[%c0_22, %c0_23, %c1, %c1_24], %16 {strides = array<i32>} : memref<2x5x18x18xf32, #tpu.memory_space<vmem>>, vector<2x5x16x16xf32>,
    return
  }
  func.func @transform_0(%arg0: i32) -> (i32, i32, i32, i32) {
    %c0_i32 = arith.constant 0 : i32
    %c0_i32_0 = arith.constant 0 : i32
    %c0_i32_1 = arith.constant 0 : i32
    %c0_i32_2 = arith.constant 0 : i32
    return %arg0, %c0_i32, %c0_i32_0, %c0_i32_1 : i32, i32, i32, i32
  }
  func.func @transform_1(%arg0: i32) -> (i32, i32, i32, i32) {
    %c0_i32 = arith.constant 0 : i32
    %c0_i32_0 = arith.constant 0 : i32
    %c0_i32_1 = arith.constant 0 : i32
    %c0_i32_2 = arith.constant 0 : i32
    return %arg0, %c0_i32, %c0_i32_0, %c0_i32_1 : i32, i32, i32, i32
  }
}

</mosaic_0001>

<llo_original>
// kernel: tpu_custom_call.1
$region0: #{tpu_custom_call.1}
  #allocation0 [shape = 'u32[]', space=smem, size = 0x4, offset = 0x4, fixed_abs, tag = 'smem constant byte address 0x4 - core index']
  #allocation1 [shape = 'u32[144,128]{1,0:T(1,128)}', space=vmem, size = 0x12000, scoped, tag = 'internal scratch']
  %s0 = inlined_call_operand.hbm [shape: f32[2,5,16,16], index: 0, kind: input, shape index: {}]
  %s1 = inlined_call_operand.vmem [shape: f32[2,5,18,18], index: 1, kind: output, shape index: {}]
  %s2 = sld [smem:[#allocation0]]
  $region18: #{tpu_custom_call.1} parent=0
    _
  %s4 = ssub.s32 1, %s2
  %s5 = scalar_select 0, %s4, %s2
  $region1: #{tpu_custom_call.1} parent=0
    #allocation2 [shape = 'u8[81920]{0}', space=vmem, size = 0x14000, scoped, tag = 'input window, operand 0, single buffered']
    #allocation3 [shape = 's32[1]{0}', space=sflag, size = 0x4, scoped, tag = 'scoped memory for tpu_custom_call.1']
    %6 = vsyncpa [#allocation3], 0
    // Predicated region
    $region2: #{tpu_custom_call.1} parent=1 // pred_check
      _
    $region3: #{tpu_custom_call.1} parent=1 // pred_check_branch
      %8 = sbr.rel (0) target = $region5
    $region4: #{tpu_custom_call.1} parent=1 // pred_region
      %s10 = ssub.s32 2560, 2560
      %11 = vsyncadd [#allocation3], %s10
      %s12 = sshll.u32 [#allocation2], 4
      %s13 = int_to_ptr.vmem [resolvable:$true] %s12
      %18 = dma.hbm_to_vmem [thread:$0]  %s0, 2560, %s13, [#allocation3], 128, 128, 8
    $region5: #{tpu_custom_call.1} parent=1 // pred_fallthru
      _
    // Predicated region
    $region6: #{tpu_custom_call.1} parent=1 // pred_check
      _
    $region7: #{tpu_custom_call.1} parent=1 // pred_check_branch
      %20 = sbr.rel (0) target = $region9
    $region8: #{tpu_custom_call.1} parent=1 // pred_region
      %21 = dma.done [#allocation3], 2560
    $region9: #{tpu_custom_call.1} parent=1 // pred_fallthru
      _
    %vm22 = vcmask 139264
    %23 = vst.msk [vmem:[%s1] sm:$0x1] %vm22, 1.0
    %24 = vst.msk [vmem:[%s1 + $0x18] sm:$0x1] %vm22, 0.0
    %25 = vst.msk [vmem:[%s1 + $0x30] sm:$0x1] %vm22, 0.0
    %26 = vst.msk [vmem:[%s1 + $0x48] sm:$0x1] %vm22, 0.0
    %27 = vst.msk [vmem:[%s1 + $0x60] sm:$0x1] %vm22, 0.0
    %28 = vst.msk [vmem:[%s1 + $0x78] sm:$0x1] %vm22, 1.0
    %29 = vst.msk [vmem:[%s1 + $0x90] sm:$0x1] %vm22, 0.0
    %30 = vst.msk [vmem:[%s1 + $0xa8] sm:$0x1] %vm22, 0.0
    %31 = vst.msk [vmem:[%s1 + $0xc0] sm:$0x1] %vm22, 0.0
    %32 = vst.msk [vmem:[%s1 + $0xd8] sm:$0x1] %vm22, 0.0
    %33 = vst.msk [vmem:[%s1 + $0x11] sm:$0x1] %vm22, 1.0
    %34 = vst.msk [vmem:[%s1 + $0x29] sm:$0x1] %vm22, 0.0
    %35 = vst.msk [vmem:[%s1 + $0x41] sm:$0x1] %vm22, 0.0
    %36 = vst.msk [vmem:[%s1 + $0x59] sm:$0x1] %vm22, 0.0
    %37 = vst.msk [vmem:[%s1 + $0x71] sm:$0x1] %vm22, 0.0
    %38 = vst.msk [vmem:[%s1 + $0x89] sm:$0x1] %vm22, 1.0
    %39 = vst.msk [vmem:[%s1 + $0xa1] sm:$0x1] %vm22, 0.0
    %40 = vst.msk [vmem:[%s1 + $0xb9] sm:$0x1] %vm22, 0.0
    %41 = vst.msk [vmem:[%s1 + $0xd1] sm:$0x1] %vm22, 0.0
    %42 = vst.msk [vmem:[%s1 + $0xe9] sm:$0x1] %vm22, 0.0
    %vm43 = vcmask 7168
    %44 = vst.msk [vmem:[%s1] sm:$0xff] %vm43, 1.0
    %45 = vst.msk [vmem:[%s1 + $0x8] sm:$0xff] %vm43, 1.0
    %vm46 = vcmask 1024
    %47 = vst.msk [vmem:[%s1 + $0x10] sm:$0x3] %vm46, 1.0
    %48 = vst.msk [vmem:[%s1 + $0x18] sm:$0xff] %vm43, 0.0
    %49 = vst.msk [vmem:[%s1 + $0x20] sm:$0xff] %vm43, 0.0
    %50 = vst.msk [vmem:[%s1 + $0x28] sm:$0x3] %vm46, 0.0
    %51 = vst.msk [vmem:[%s1 + $0x30] sm:$0xff] %vm43, 0.0
    %52 = vst.msk [vmem:[%s1 + $0x38] sm:$0xff] %vm43, 0.0
    %53 = vst.msk [vmem:[%s1 + $0x40] sm:$0x3] %vm46, 0.0
    %54 = vst.msk [vmem:[%s1 + $0x48] sm:$0xff] %vm43, 0.0
    %55 = vst.msk [vmem:[%s1 + $0x50] sm:$0xff] %vm43, 0.0
    %56 = vst.msk [vmem:[%s1 + $0x58] sm:$0x3] %vm46, 0.0
    %57 = vst.msk [vmem:[%s1 + $0x60] sm:$0xff] %vm43, 0.0
    %58 = vst.msk [vmem:[%s1 + $0x68] sm:$0xff] %vm43, 0.0
    %59 = vst.msk [vmem:[%s1 + $0x70] sm:$0x3] %vm46, 0.0
    %60 = vst.msk [vmem:[%s1 + $0x78] sm:$0xff] %vm43, 1.0
    %61 = vst.msk [vmem:[%s1 + $0x80] sm:$0xff] %vm43, 1.0
    %62 = vst.msk [vmem:[%s1 + $0x88] sm:$0x3] %vm46, 1.0
    %63 = vst.msk [vmem:[%s1 + $0x90] sm:$0xff] %vm43, 0.0
    %64 = vst.msk [vmem:[%s1 + $0x98] sm:$0xff] %vm43, 0.0
    %65 = vst.msk [vmem:[%s1 + $0xa0] sm:$0x3] %vm46, 0.0
    %66 = vst.msk [vmem:[%s1 + $0xa8] sm:$0xff] %vm43, 0.0
    %67 = vst.msk [vmem:[%s1 + $0xb0] sm:$0xff] %vm43, 0.0
    %68 = vst.msk [vmem:[%s1 + $0xb8] sm:$0x3] %vm46, 0.0
    %69 = vst.msk [vmem:[%s1 + $0xc0] sm:$0xff] %vm43, 0.0
    %70 = vst.msk [vmem:[%s1 + $0xc8] sm:$0xff] %vm43, 0.0
    %71 = vst.msk [vmem:[%s1 + $0xd0] sm:$0x3] %vm46, 0.0
    %72 = vst.msk [vmem:[%s1 + $0xd8] sm:$0xff] %vm43, 0.0
    %73 = vst.msk [vmem:[%s1 + $0xe0] sm:$0xff] %vm43, 0.0
    %74 = vst.msk [vmem:[%s1 + $0xe8] sm:$0x3] %vm46, 0.0
    %vm75 = vcmask 146568
    %76 = vst.msk [vmem:[%s1] sm:$0xff] %vm75, 1.0
    %77 = vst.msk [vmem:[%s1 + $0x8] sm:$0xff] %vm75, 1.0
    %vm78 = vcmask 140424
    %79 = vst.msk [vmem:[%s1 + $0x10] sm:$0x3] %vm78, 1.0
    %80 = vst.msk [vmem:[%s1 + $0x18] sm:$0xff] %vm75, 0.0
    %81 = vst.msk [vmem:[%s1 + $0x20] sm:$0xff] %vm75, 0.0
    %82 = vst.msk [vmem:[%s1 + $0x28] sm:$0x3] %vm78, 0.0
    %83 = vst.msk [vmem:[%s1 + $0x30] sm:$0xff] %vm75, 0.0
    %84 = vst.msk [vmem:[%s1 + $0x38] sm:$0xff] %vm75, 0.0
    %85 = vst.msk [vmem:[%s1 + $0x40] sm:$0x3] %vm78, 0.0
    %86 = vst.msk [vmem:[%s1 + $0x48] sm:$0xff] %vm75, 0.0
    %87 = vst.msk [vmem:[%s1 + $0x50] sm:$0xff] %vm75, 0.0
    %88 = vst.msk [vmem:[%s1 + $0x58] sm:$0x3] %vm78, 0.0
    %89 = vst.msk [vmem:[%s1 + $0x60] sm:$0xff] %vm75, 0.0
    %90 = vst.msk [vmem:[%s1 + $0x68] sm:$0xff] %vm75, 0.0
    %91 = vst.msk [vmem:[%s1 + $0x70] sm:$0x3] %vm78, 0.0
    %92 = vst.msk [vmem:[%s1 + $0x78] sm:$0xff] %vm75, 1.0
    %93 = vst.msk [vmem:[%s1 + $0x80] sm:$0xff] %vm75, 1.0
    %94 = vst.msk [vmem:[%s1 + $0x88] sm:$0x3] %vm78, 1.0
    %95 = vst.msk [vmem:[%s1 + $0x90] sm:$0xff] %vm75, 0.0
    %96 = vst.msk [vmem:[%s1 + $0x98] sm:$0xff] %vm75, 0.0
    %97 = vst.msk [vmem:[%s1 + $0xa0] sm:$0x3] %vm78, 0.0
    %98 = vst.msk [vmem:[%s1 + $0xa8] sm:$0xff] %vm75, 0.0
    %99 = vst.msk [vmem:[%s1 + $0xb0] sm:$0xff] %vm75, 0.0
    %100 = vst.msk [vmem:[%s1 + $0xb8] sm:$0x3] %vm78, 0.0
    %101 = vst.msk [vmem:[%s1 + $0xc0] sm:$0xff] %vm75, 0.0
    %102 = vst.msk [vmem:[%s1 + $0xc8] sm:$0xff] %vm75, 0.0
    %103 = vst.msk [vmem:[%s1 + $0xd0] sm:$0x3] %vm78, 0.0
    %104 = vst.msk [vmem:[%s1 + $0xd8] sm:$0xff] %vm75, 0.0
    %105 = vst.msk [vmem:[%s1 + $0xe0] sm:$0xff] %vm75, 0.0
    %106 = vst.msk [vmem:[%s1 + $0xe8] sm:$0x3] %vm78, 0.0
    %v107 = vld [vmem:[#allocation2] sm:$0xff]
    %v108 = vld [vmem:[#allocation2 + $0x8] sm:$0xff]
    %v109 = vld [vmem:[#allocation2 + $0x10] sm:$0xff]
    %v110 = vld [vmem:[#allocation2 + $0x18] sm:$0xff]
    %v111 = vld [vmem:[#allocation2 + $0x20] sm:$0xff]
    %v112 = vld [vmem:[#allocation2 + $0x28] sm:$0xff]
    %v113 = vld [vmem:[#allocation2 + $0x30] sm:$0xff]
    %v114 = vld [vmem:[#allocation2 + $0x38] sm:$0xff]
    %v115 = vld [vmem:[#allocation2 + $0x40] sm:$0xff]
    %v116 = vld [vmem:[#allocation2 + $0x48] sm:$0xff]
    %v117 = vld [vmem:[#allocation2 + $0x50] sm:$0xff]
    %v118 = vld [vmem:[#allocation2 + $0x58] sm:$0xff]
    %v119 = vld [vmem:[#allocation2 + $0x60] sm:$0xff]
    %v120 = vld [vmem:[#allocation2 + $0x68] sm:$0xff]
    %v121 = vld [vmem:[#allocation2 + $0x70] sm:$0xff]
    %v122 = vld [vmem:[#allocation2 + $0x78] sm:$0xff]
    %v123 = vld [vmem:[#allocation2 + $0x80] sm:$0xff]
    %v124 = vld [vmem:[#allocation2 + $0x88] sm:$0xff]
    %v125 = vld [vmem:[#allocation2 + $0x90] sm:$0xff]
    %v126 = vld [vmem:[#allocation2 + $0x98] sm:$0xff]
    %147 = vrot.lane.b32.xlu0 %v107, 1
    %v148 = vpop.permute.xlu0 %147
    %149 = vrot.lane.b32.xlu0 %v108, 1
    %v150 = vpop.permute.xlu0 %149
    %151 = vrot.lane.b32.xlu0 %v109, 1
    %v152 = vpop.permute.xlu0 %151
    %153 = vrot.lane.b32.xlu0 %v110, 1
    %v154 = vpop.permute.xlu0 %153
    %155 = vrot.lane.b32.xlu0 %v111, 1
    %v156 = vpop.permute.xlu0 %155
    %157 = vrot.lane.b32.xlu0 %v112, 1
    %v158 = vpop.permute.xlu0 %157
    %159 = vrot.lane.b32.xlu0 %v113, 1
    %v160 = vpop.permute.xlu0 %159
    %161 = vrot.lane.b32.xlu0 %v114, 1
    %v162 = vpop.permute.xlu0 %161
    %163 = vrot.lane.b32.xlu0 %v115, 1
    %v164 = vpop.permute.xlu0 %163
    %165 = vrot.lane.b32.xlu0 %v116, 1
    %v166 = vpop.permute.xlu0 %165
    %167 = vrot.lane.b32.xlu0 %v117, 1
    %v168 = vpop.permute.xlu0 %167
    %169 = vrot.lane.b32.xlu0 %v118, 1
    %v170 = vpop.permute.xlu0 %169
    %171 = vrot.lane.b32.xlu0 %v119, 1
    %v172 = vpop.permute.xlu0 %171
    %173 = vrot.lane.b32.xlu0 %v120, 1
    %v174 = vpop.permute.xlu0 %173
    %175 = vrot.lane.b32.xlu0 %v121, 1
    %v176 = vpop.permute.xlu0 %175
    %177 = vrot.lane.b32.xlu0 %v122, 1
    %v178 = vpop.permute.xlu0 %177
    %179 = vrot.lane.b32.xlu0 %v123, 1
    %v180 = vpop.permute.xlu0 %179
    %181 = vrot.lane.b32.xlu0 %v124, 1
    %v182 = vpop.permute.xlu0 %181
    %183 = vrot.lane.b32.xlu0 %v125, 1
    %v184 = vpop.permute.xlu0 %183
    %185 = vrot.lane.b32.xlu0 %v126, 1
    %v186 = vpop.permute.xlu0 %185
    %vm207 = vcmask 138248
    %208 = vst.msk [vmem:[%s1 + $0x1] sm:$0xff] %vm207, %v148
    %209 = vst.msk [vmem:[%s1 + $0x9] sm:$0xff] %vm207, %v150
    %210 = vst.msk [vmem:[%s1 + $0x19] sm:$0xff] %vm207, %v152
    %211 = vst.msk [vmem:[%s1 + $0x21] sm:$0xff] %vm207, %v154
    %212 = vst.msk [vmem:[%s1 + $0x31] sm:$0xff] %vm207, %v156
    %213 = vst.msk [vmem:[%s1 + $0x39] sm:$0xff] %vm207, %v158
    %214 = vst.msk [vmem:[%s1 + $0x49] sm:$0xff] %vm207, %v160
    %215 = vst.msk [vmem:[%s1 + $0x51] sm:$0xff] %vm207, %v162
    %216 = vst.msk [vmem:[%s1 + $0x61] sm:$0xff] %vm207, %v164
    %217 = vst.msk [vmem:[%s1 + $0x69] sm:$0xff] %vm207, %v166
    %218 = vst.msk [vmem:[%s1 + $0x79] sm:$0xff] %vm207, %v168
    %219 = vst.msk [vmem:[%s1 + $0x81] sm:$0xff] %vm207, %v170
    %220 = vst.msk [vmem:[%s1 + $0x91] sm:$0xff] %vm207, %v172
    %221 = vst.msk [vmem:[%s1 + $0x99] sm:$0xff] %vm207, %v174
    %222 = vst.msk [vmem:[%s1 + $0xa9] sm:$0xff] %vm207, %v176
    %223 = vst.msk [vmem:[%s1 + $0xb1] sm:$0xff] %vm207, %v178
    %224 = vst.msk [vmem:[%s1 + $0xc1] sm:$0xff] %vm207, %v180
    %225 = vst.msk [vmem:[%s1 + $0xc9] sm:$0xff] %vm207, %v182
    %226 = vst.msk [vmem:[%s1 + $0xd9] sm:$0xff] %vm207, %v184
    %227 = vst.msk [vmem:[%s1 + $0xe1] sm:$0xff] %vm207, %v186
    // Predicated region
    $region10: #{tpu_custom_call.1} parent=1 // pred_check
      _
    $region11: #{tpu_custom_call.1} parent=1 // pred_check_branch
      %229 = sbr.rel (0) target = $region13
    $region12: #{tpu_custom_call.1} parent=1 // pred_region
      _
    $region13: #{tpu_custom_call.1} parent=1 // pred_fallthru
      _
    // Predicated region
    $region14: #{tpu_custom_call.1} parent=1 // pred_check
      _
    $region15: #{tpu_custom_call.1} parent=1 // pred_check_branch
      %231 = sbr.rel (0) target = $region17
    $region16: #{tpu_custom_call.1} parent=1 // pred_region
      _
    $region17: #{tpu_custom_call.1} parent=1 // pred_fallthru
      _
    %232 = vsyncpa [#allocation3], 1

</llo_original>
